<compile_context>
chip_gen: v6e
topology: v6e:2x2x1
jax: 0.10.0
libtpu: 0.0.40
codegen_flags: <defaults>
</compile_context>

<pallas_src>
import jax
import jax.numpy as jnp
from jax.experimental import pallas as pl
from jax.experimental.pallas import tpu as pltpu

STATE_DIM = 8
ACTION_DIM = 1
HIDDEN_DIM = 128
LANE = 128


def _round_up(x, m):
    return (x + m - 1) // m * m


def _choose_tiling(batch, tile_b):
    """Pick (tile_b, num_tiles).  tile_b is a multiple of 128 (it is the lane dim of
    x^T / the output), and the tile count is kept even when >1 so both v7x TCs get work."""
    tile_b = max(LANE, _round_up(int(tile_b), LANE))
    b_lanes = _round_up(batch, LANE)
    if b_lanes <= tile_b:
        return b_lanes, 1                                   # one tile covers the batch
    num = pl.cdiv(b_lanes, tile_b)
    if num % 2:                                             # prefer an even tile count
        alt_tile = _round_up(pl.cdiv(b_lanes, num + 1), LANE)
        alt_num = pl.cdiv(b_lanes, alt_tile)
        if alt_num % 2 == 0:
            tile_b, num = alt_tile, alt_num
    return tile_b, num


def qnetwork_kernel(x_ref, w1_ref, b1_ref, w2_ref, b2_ref, w3_ref, b3_ref, o_ref):
    """One batch tile, computed feature-major (batch on lanes).

    x_ref : [STATE_DIM, tile_b] f32  (cast to the MXU dtype in-kernel)
    w1/w2/w3 : PyTorch-layout weights ([out, in]), resident in VMEM across tiles
    b1/b2 : [HIDDEN, 1] f32 columns;  b3 : (1, 1) f32 scalar in SMEM
    o_ref : [ACTION_DIM, tile_b] f32  -- lane-dense, unmasked stores
    """
    xt = x_ref[...].astype(w1_ref.dtype)                                     # in-kernel cast
    h1 = jnp.dot(w1_ref[...], xt, preferred_element_type=jnp.float32) + b1_ref[...]
    h1 = jnp.maximum(h1, 0.0).astype(w2_ref.dtype)                           # fused ReLU+cast
    h2 = jnp.dot(w2_ref[...], h1, preferred_element_type=jnp.float32) + b2_ref[...]
    h2 = jnp.maximum(h2, 0.0).astype(w3_ref.dtype)
    q = jnp.dot(w3_ref[...], h2, preferred_element_type=jnp.float32) + b3_ref[0, 0]
    o_ref[...] = q.astype(o_ref.dtype)                                       # [1, tile_b]


def qnetwork_forward(x, params, *, tile_b=2048, matmul_dtype=jnp.float32):
    """x: [B, STATE_DIM] float32 -> [B, ACTION_DIM] float32.

    tile_b: batch tile (rows) streamed per grid step; 1024-4096 amortizes the ~0.35 us
        per-step overhead.  It is rounded to a multiple of 128 internally.
    matmul_dtype: dtype fed to the MXU.  jnp.bfloat16 is recommended on v5e (f32 matmuls
        are emulated there) as well as v6e/v7x; accumulation, bias and ReLU stay f32.
    """
    w1, b1, w2, b2, w3, b3 = params
    B = x.shape[0]

    tile_b, num_tiles = _choose_tiling(B, tile_b)
    b_pad = tile_b * num_tiles

    # Transposed orientation: batch on lanes.  Pad + transpose is a tiny single XLA pass
    # over the 8-column x; x stays f32 here (the matmul-dtype cast happens in-kernel).
    xt = jnp.pad(x.astype(jnp.float32).T, ((0, 0), (0, b_pad - B)))

    # Tiny resident weights: cast once in the wrapper; biases stay f32.
    w1 = w1.astype(matmul_dtype)
    w2 = w2.astype(matmul_dtype)
    w3 = w3.astype(matmul_dtype)
    b1 = b1.astype(jnp.float32)
    b2 = b2.astype(jnp.float32)
    b3 = b3.astype(jnp.float32)

    # Constant block index -> param stays VMEM-resident across the batch grid.
    resident = lambda shape: pl.BlockSpec(shape, lambda i: (0, 0))

    w_item = jnp.dtype(matmul_dtype).itemsize
    cost = pl.CostEstimate(
        flops=2 * b_pad * (STATE_DIM * HIDDEN_DIM
                           + HIDDEN_DIM * HIDDEN_DIM
                           + HIDDEN_DIM * ACTION_DIM),
        transcendentals=0,
        bytes_accessed=(b_pad * STATE_DIM * 4                                   # x^T (f32)
                        + (STATE_DIM + HIDDEN_DIM + ACTION_DIM) * HIDDEN_DIM * w_item
                        + (2 * HIDDEN_DIM + 1) * 4                              # biases
                        + b_pad * ACTION_DIM * 4),                              # out
    )

    out = pl.pallas_call(
        qnetwork_kernel,
        out_shape=jax.ShapeDtypeStruct((ACTION_DIM, b_pad), jnp.float32),
        grid_spec=pltpu.PrefetchScalarGridSpec(
            num_scalar_prefetch=0,
            grid=(num_tiles,),
            in_specs=[
                pl.BlockSpec((STATE_DIM, tile_b), lambda i: (0, i)),   # streamed x^T tiles
                resident((HIDDEN_DIM, STATE_DIM)),                     # W1  [out, in]
                resident((HIDDEN_DIM, 1)),                             # b1  column
                resident((HIDDEN_DIM, HIDDEN_DIM)),                    # W2  [out, in]
                resident((HIDDEN_DIM, 1)),                             # b2  column
                resident((ACTION_DIM, HIDDEN_DIM)),                    # W3  [out, in]
                pl.BlockSpec(memory_space=pltpu.MemorySpace.SMEM),     # b3 scalar in SMEM
            ],
            out_specs=pl.BlockSpec((ACTION_DIM, tile_b), lambda i: (0, i)),  # lane-dense row
        ),
        compiler_params=pltpu.CompilerParams(
            # Batch tiles are independent -> megacore sharding on v7x (harmless on v5e/v6e).
            dimension_semantics=("parallel",),
        ),
        cost_estimate=cost,
    )(xt, w1, b1, w2, b2, w3, b3)

    # Padded lanes carry garbage (ReLU of biases); slice them off.
    return out[0, :B].reshape(B, ACTION_DIM)


def init_params(key):
    """Deterministic init mirroring nn.Linear's uniform(-1/sqrt(fan_in), 1/sqrt(fan_in)).
    Weights are stored in PyTorch layout ([out, in]); biases as [out, 1] columns."""
    ks = jax.random.split(key, 6)

    def linear_init(kw, kb, fan_in, fan_out):
        bound = 1.0 / jnp.sqrt(jnp.float32(fan_in))
        w = jax.random.uniform(kw, (fan_out, fan_in), jnp.float32, -bound, bound)
        b = jax.random.uniform(kb, (fan_out, 1), jnp.float32, -bound, bound)
        return w, b

    w1, b1 = linear_init(ks[0], ks[1], STATE_DIM, HIDDEN_DIM)
    w2, b2 = linear_init(ks[2], ks[3], HIDDEN_DIM, HIDDEN_DIM)
    w3, b3 = linear_init(ks[4], ks[5], HIDDEN_DIM, ACTION_DIM)   # [1, 128], [1, 1]
    return (w1, b1, w2, b2, w3, b3)


def reference_forward(x, params):
    w1, b1, w2, b2, w3, b3 = params
    h1 = jnp.maximum(x @ w1.T + b1.T, 0.0)
    h2 = jnp.maximum(h1 @ w2.T + b2.T, 0.0)
    return h2 @ w3.T + b3.T


if __name__ == "__main__":
    key = jax.random.PRNGKey(0)
    k_params, k_x1, k_x2 = jax.random.split(key, 3)
    params = init_params(k_params)

    # Small batch (single tile, lane-padded internally).
    x_small = jax.random.normal(k_x1, (8, STATE_DIM), jnp.float32)
    out_small = jax.block_until_ready(qnetwork_forward(x_small, params))
    ref_small = reference_forward(x_small, params)
    assert out_small.shape == (8, ACTION_DIM), out_small.shape
    assert jnp.allclose(out_small, ref_small, atol=1e-4, rtol=1e-4), "f32 small-batch mismatch"

    # Non-multiple batch with a small tile: exercises the multi-tile grid, pipelining,
    # resident weights and padding.
    x_big = jax.random.normal(k_x2, (300, STATE_DIM), jnp.float32)
    ref_big = reference_forward(x_big, params)
    out_multi = jax.block_until_ready(qnetwork_forward(x_big, params, tile_b=128))
    assert out_multi.shape == (300, ACTION_DIM), out_multi.shape
    assert jnp.allclose(out_multi, ref_big, atol=1e-4, rtol=1e-4), "f32 multi-tile mismatch"

    # Default (large-tile, single-tile here) config.
    out_def = jax.block_until_ready(qnetwork_forward(x_big, params))
    assert jnp.allclose(out_def, ref_big, atol=1e-4, rtol=1e-4), "f32 default-tile mismatch"

    # bf16 MXU-input fast path (recommended on v5e as well as v6e/v7x); f32 accumulation,
    # so only input/weight quantization error -> loose tolerance vs the f32 reference.
    out_bf16 = jax.block_until_ready(
        qnetwork_forward(x_big, params, matmul_dtype=jnp.bfloat16))
    assert out_bf16.shape == (300, ACTION_DIM), out_bf16.shape
    assert jnp.allclose(out_bf16, ref_big, atol=1e-1, rtol=1e-1), "bf16 path mismatch"

    print("KERNEL_OK")
</pallas_src>

<mosaic_0001>
module attributes {stable_mosaic.version = 11 : i64} {
  func.func @qnetwork_kernel(%arg0: i32, %arg1: memref<8x128xf32, #tpu.memory_space<vmem>>, %arg2: memref<128x8xf32, #tpu.memory_space<vmem>>, %arg3: memref<128x1xf32, #tpu.memory_space<vmem>>, %arg4: memref<128x128xf32, #tpu.memory_space<vmem>>, %arg5: memref<128x1xf32, #tpu.memory_space<vmem>>, %arg6: memref<1x128xf32, #tpu.memory_space<vmem>>, %arg7: memref<1x1xf32, #tpu.memory_space<smem>>, %arg8: memref<1x128xf32, #tpu.memory_space<vmem>>) attributes {dimension_semantics = [#tpu.dimension_semantics<parallel>], iteration_bounds = array<i64: 1>, scalar_prefetch = 0 : i64, scratch_operands = 0 : i64, tpu.core_type = #tpu.core_type<tc>, window_params = [{transform_indices = @transform_0, window_bounds = array<i64: 8, 128>}, {pipeline_mode = #tpu.pipeline_mode<synchronous>, transform_indices = @transform_1, window_bounds = array<i64: 128, 8>}, {pipeline_mode = #tpu.pipeline_mode<synchronous>, transform_indices = @transform_2, window_bounds = array<i64: 128, 1>}, {pipeline_mode = #tpu.pipeline_mode<synchronous>, transform_indices = @transform_3, window_bounds = array<i64: 128, 128>}, {pipeline_mode = #tpu.pipeline_mode<synchronous>, transform_indices = @transform_4, window_bounds = array<i64: 128, 1>}, {pipeline_mode = #tpu.pipeline_mode<synchronous>, transform_indices = @transform_5, window_bounds = array<i64: 1, 128>}, {transform_indices = @transform_6, window_bounds = array<i64: 1, 1>}, {transform_indices = @transform_7, window_bounds = array<i64: 1, 128>}]} {
    %c0 = arith.constant 0 : index
    %c0_0 = arith.constant 0 : index
    %0 = vector.load %arg1[%c0, %c0_0] : memref<8x128xf32, #tpu.memory_space<vmem>>, vector<8x128xf32>
    %c0_1 = arith.constant 0 : index
    %c0_2 = arith.constant 0 : index
    %1 = vector.load %arg2[%c0_1, %c0_2] : memref<128x8xf32, #tpu.memory_space<vmem>>, vector<128x8xf32>
    %cst = arith.constant dense<0.000000e+00> : vector<128x128xf32>
    %2 = tpu.matmul %1, %0, %cst {dimension_numbers = #tpu.dot_dimension_numbers<[1], [0], [0], [1], [0, 0, 1, 1], [], []>} : vector<128x8xf32>, vector<8x128xf32>, vector<128x128xf32> -> vector<128x128xf32>
    %c0_3 = arith.constant 0 : index
    %c0_4 = arith.constant 0 : index
    %3 = vector.load %arg3[%c0_3, %c0_4] : memref<128x1xf32, #tpu.memory_space<vmem>>, vector<128x1xf32>
    %4 = vector.broadcast %3 : vector<128x1xf32> to vector<128x128xf32>
    %5 = arith.addf %2, %4 : vector<128x128xf32>
    %cst_5 = arith.constant 0.000000e+00 : f32
    %6 = vector.broadcast %cst_5 : f32 to vector<128x128xf32>
    %7 = arith.maximumf %5, %6 : vector<128x128xf32>
    %c0_6 = arith.constant 0 : index
    %c0_7 = arith.constant 0 : index
    %8 = vector.load %arg4[%c0_6, %c0_7] : memref<128x128xf32, #tpu.memory_space<vmem>>, vector<128x128xf32>
    %cst_8 = arith.constant dense<0.000000e+00> : vector<128x128xf32>
    %9 = tpu.matmul %8, %7, %cst_8 {dimension_numbers = #tpu.dot_dimension_numbers<[1], [0], [0], [1], [0, 0, 1, 1], [], []>} : vector<128x128xf32>, vector<128x128xf32>, vector<128x128xf32> -> vector<128x128xf32>
    %c0_9 = arith.constant 0 : index
    %c0_10 = arith.constant 0 : index
    %10 = vector.load %arg5[%c0_9, %c0_10] : memref<128x1xf32, #tpu.memory_space<vmem>>, vector<128x1xf32>
    %11 = vector.broadcast %10 : vector<128x1xf32> to vector<128x128xf32>
    %12 = arith.addf %9, %11 : vector<128x128xf32>
    %cst_11 = arith.constant 0.000000e+00 : f32
    %13 = vector.broadcast %cst_11 : f32 to vector<128x128xf32>
    %14 = arith.maximumf %12, %13 : vector<128x128xf32>
    %c0_12 = arith.constant 0 : index
    %c0_13 = arith.constant 0 : index
    %15 = vector.load %arg6[%c0_12, %c0_13] : memref<1x128xf32, #tpu.memory_space<vmem>>, vector<1x128xf32>
    %cst_14 = arith.constant dense<0.000000e+00> : vector<1x128xf32>
    %16 = tpu.matmul %15, %14, %cst_14 {dimension_numbers = #tpu.dot_dimension_numbers<[1], [0], [0], [1], [0, 0, 1, 1], [], []>} : vector<1x128xf32>, vector<128x128xf32>, vector<1x128xf32> -> vector<1x128xf32>
    %c0_15 = arith.constant 0 : index
    %c0_16 = arith.constant 0 : index
    %17 = memref.load %arg7[%c0_15, %c0_16] : memref<1x1xf32, #tpu.memory_space<smem>>
    %18 = vector.broadcast %17 : f32 to vector<1x128xf32>
    %19 = arith.addf %16, %18 : vector<1x128xf32>
    %c0_17 = arith.constant 0 : index
    %c0_18 = arith.constant 0 : index
    %20 = vector.load %arg8[%c0_17, %c0_18] : memref<1x128xf32, #tpu.memory_space<vmem>>, vector<1x128xf32>
    tpu.vector_store %arg8[%c0_17, %c0_18], %19 {strides = array<i32>} : memref<1x128xf32, #tpu.memory_space<vmem>>, vector<1x128xf32>,
    return
  }
  func.func @transform_0(%arg0: i32) -> (i32, i32) {
    %c0_i32 = arith.constant 0 : i32
    %c0_i32_0 = arith.constant 0 : i32
    return %c0_i32, %arg0 : i32, i32
  }
  func.func @transform_1(%arg0: i32) -> (i32, i32) {
    %c0_i32 = arith.constant 0 : i32
    %c0_i32_0 = arith.constant 0 : i32
    %c0_i32_1 = arith.constant 0 : i32
    return %c0_i32, %c0_i32_0 : i32, i32
  }
  func.func @transform_2(%arg0: i32) -> (i32, i32) {
    %c0_i32 = arith.constant 0 : i32
    %c0_i32_0 = arith.constant 0 : i32
    %c0_i32_1 = arith.constant 0 : i32
    return %c0_i32, %c0_i32_0 : i32, i32
  }
  func.func @transform_3(%arg0: i32) -> (i32, i32) {
    %c0_i32 = arith.constant 0 : i32
    %c0_i32_0 = arith.constant 0 : i32
    %c0_i32_1 = arith.constant 0 : i32
    return %c0_i32, %c0_i32_0 : i32, i32
  }
  func.func @transform_4(%arg0: i32) -> (i32, i32) {
    %c0_i32 = arith.constant 0 : i32
    %c0_i32_0 = arith.constant 0 : i32
    %c0_i32_1 = arith.constant 0 : i32
    return %c0_i32, %c0_i32_0 : i32, i32
  }
  func.func @transform_5(%arg0: i32) -> (i32, i32) {
    %c0_i32 = arith.constant 0 : i32
    %c0_i32_0 = arith.constant 0 : i32
    %c0_i32_1 = arith.constant 0 : i32
    return %c0_i32, %c0_i32_0 : i32, i32
  }
  func.func @transform_6(%arg0: i32) -> (i32, i32) {
    %c0_i32 = arith.constant 0 : i32
    %c0_i32_0 = arith.constant 0 : i32
    %c0_i32_1 = arith.constant 0 : i32
    return %c0_i32, %c0_i32_0 : i32, i32
  }
  func.func @transform_7(%arg0: i32) -> (i32, i32) {
    %c0_i32 = arith.constant 0 : i32
    %c0_i32_0 = arith.constant 0 : i32
    return %c0_i32, %arg0 : i32, i32
  }
}

</mosaic_0001>

<llo_original>
// kernel: tpu_custom_call.1
$region0: #{tpu_custom_call.1}
  #allocation0 [shape = 'u32[]', space=smem, size = 0x4, offset = 0x4, fixed_abs, tag = 'smem constant byte address 0x4 - core index']
  #allocation1 [shape = 'u32[144,128]{1,0:T(1,128)}', space=vmem, size = 0x12000, scoped, tag = 'internal scratch']
  #allocation2 [shape = 'f32[1,1]{1,0:T(1,128)S(6)}', space=smem, size = 0x200, scoped, tag = 'scoped memory for tpu_custom_call.1']
  %s0 = inlined_call_operand.vmem [shape: f32[8,128], index: 0, kind: input, shape index: {}]
  %s1 = inlined_call_operand.vmem [shape: f32[128,8], index: 1, kind: input, shape index: {}]
  %s2 = inlined_call_operand.vmem [shape: f32[128,1], index: 2, kind: input, shape index: {}]
  %s3 = inlined_call_operand.vmem [shape: f32[128,128], index: 3, kind: input, shape index: {}]
  %s4 = inlined_call_operand.vmem [shape: f32[128,1], index: 4, kind: input, shape index: {}]
  %s5 = inlined_call_operand.vmem [shape: f32[1,128], index: 5, kind: input, shape index: {}]
  %s6 = inlined_call_operand.<no memory space> [shape: f32[1,1], index: 6, kind: input, shape index: {}]
  %s7 = inlined_call_operand.hbm [shape: f32[1,128], index: 7, kind: output, shape index: {}]
  %s8 = sld [smem:[#allocation0]]
  $region38: #{tpu_custom_call.1} parent=0
    _
  %s10 = ssub.s32 1, %s8
  %s11 = scalar_select 0, %s10, %s8
  %12 = sst [smem:[#allocation2]] %s6
  $region1: #{tpu_custom_call.1} parent=0
    #allocation3 [shape = 'u8[512]{0}', space=vmem, size = 0x400, scoped, tag = 'output window, operand 0, single buffered']
    #allocation4 [shape = 's32[1]{0}', space=sflag, size = 0x4, scoped, tag = 'scoped memory for tpu_custom_call.1']
    %13 = vsyncpa [#allocation4], 0
    // Predicated region
    $region2: #{tpu_custom_call.1} parent=1 // pred_check
      _
    $region3: #{tpu_custom_call.1} parent=1 // pred_check_branch
      %15 = sbr.rel (0) target = $region5
    $region4: #{tpu_custom_call.1} parent=1 // pred_region
      _
    $region5: #{tpu_custom_call.1} parent=1 // pred_fallthru
      _
    // Predicated region
    $region6: #{tpu_custom_call.1} parent=1 // pred_check
      _
    $region7: #{tpu_custom_call.1} parent=1 // pred_check_branch
      %17 = sbr.rel (0) target = $region9
    $region8: #{tpu_custom_call.1} parent=1 // pred_region
      _
    $region9: #{tpu_custom_call.1} parent=1 // pred_fallthru
      _
    // Predicated region
    $region10: #{tpu_custom_call.1} parent=1 // pred_check
      _
    $region11: #{tpu_custom_call.1} parent=1 // pred_check_branch
      %19 = sbr.rel (0) target = $region13
    $region12: #{tpu_custom_call.1} parent=1 // pred_region
      _
    $region13: #{tpu_custom_call.1} parent=1 // pred_fallthru
      _
    // Predicated region
    $region14: #{tpu_custom_call.1} parent=1 // pred_check
      _
    $region15: #{tpu_custom_call.1} parent=1 // pred_check_branch
      %21 = sbr.rel (0) target = $region17
    $region16: #{tpu_custom_call.1} parent=1 // pred_region
      _
    $region17: #{tpu_custom_call.1} parent=1 // pred_fallthru
      _
    // Predicated region
    $region18: #{tpu_custom_call.1} parent=1 // pred_check
      _
    $region19: #{tpu_custom_call.1} parent=1 // pred_check_branch
      %23 = sbr.rel (0) target = $region21
    $region20: #{tpu_custom_call.1} parent=1 // pred_region
      _
    $region21: #{tpu_custom_call.1} parent=1 // pred_fallthru
      _
    // Predicated region
    $region22: #{tpu_custom_call.1} parent=1 // pred_check
      _
    $region23: #{tpu_custom_call.1} parent=1 // pred_check_branch
      %25 = sbr.rel (0) target = $region25
    $region24: #{tpu_custom_call.1} parent=1 // pred_region
      _
    $region25: #{tpu_custom_call.1} parent=1 // pred_fallthru
      _
    // Predicated region
    $region26: #{tpu_custom_call.1} parent=1 // pred_check
      _
    $region27: #{tpu_custom_call.1} parent=1 // pred_check_branch
      %27 = sbr.rel (0) target = $region29
    $region28: #{tpu_custom_call.1} parent=1 // pred_region
      _
    $region29: #{tpu_custom_call.1} parent=1 // pred_fallthru
      _
    %v28 = vld [vmem:[%s0] sm:$0xff]
    %v29 = vld [vmem:[%s1] sm:$0xff]
    %v30 = vld [vmem:[%s1 + $0x8] sm:$0xff]
    %v31 = vld [vmem:[%s1 + $0x10] sm:$0xff]
    %v32 = vld [vmem:[%s1 + $0x18] sm:$0xff]
    %v33 = vld [vmem:[%s1 + $0x20] sm:$0xff]
    %v34 = vld [vmem:[%s1 + $0x28] sm:$0xff]
    %v35 = vld [vmem:[%s1 + $0x30] sm:$0xff]
    %v36 = vld [vmem:[%s1 + $0x38] sm:$0xff]
    %v37 = vld [vmem:[%s1 + $0x40] sm:$0xff]
    %v38 = vld [vmem:[%s1 + $0x48] sm:$0xff]
    %v39 = vld [vmem:[%s1 + $0x50] sm:$0xff]
    %v40 = vld [vmem:[%s1 + $0x58] sm:$0xff]
    %v41 = vld [vmem:[%s1 + $0x60] sm:$0xff]
    %v42 = vld [vmem:[%s1 + $0x68] sm:$0xff]
    %v43 = vld [vmem:[%s1 + $0x70] sm:$0xff]
    %v44 = vld [vmem:[%s1 + $0x78] sm:$0xff]
    %v45 = vld [vmem:[%s2] sm:$0xff]
    %v46 = vld [vmem:[%s2 + $0x8] sm:$0xff]
    %v47 = vld [vmem:[%s2 + $0x10] sm:$0xff]
    %v48 = vld [vmem:[%s2 + $0x18] sm:$0xff]
    %v49 = vld [vmem:[%s2 + $0x20] sm:$0xff]
    %v50 = vld [vmem:[%s2 + $0x28] sm:$0xff]
    %v51 = vld [vmem:[%s2 + $0x30] sm:$0xff]
    %v52 = vld [vmem:[%s2 + $0x38] sm:$0xff]
    %v53 = vld [vmem:[%s2 + $0x40] sm:$0xff]
    %v54 = vld [vmem:[%s2 + $0x48] sm:$0xff]
    %v55 = vld [vmem:[%s2 + $0x50] sm:$0xff]
    %v56 = vld [vmem:[%s2 + $0x58] sm:$0xff]
    %v57 = vld [vmem:[%s2 + $0x60] sm:$0xff]
    %v58 = vld [vmem:[%s2 + $0x68] sm:$0xff]
    %v59 = vld [vmem:[%s2 + $0x70] sm:$0xff]
    %v60 = vld [vmem:[%s2 + $0x78] sm:$0xff]
    %62 = vset.pattern.permute.xlu0 0
    %63 = vperm.xlu0 %62, %v45
    %v64 = vpop.permute.xlu0 %63
    %67 = vset.pattern.permute.xlu0 0
    %68 = vperm.xlu0 %67, %v46
    %v69 = vpop.permute.xlu0 %68
    %72 = vset.pattern.permute.xlu0 0
    %73 = vperm.xlu0 %72, %v47
    %v74 = vpop.permute.xlu0 %73
    %77 = vset.pattern.permute.xlu0 0
    %78 = vperm.xlu0 %77, %v48
    %v79 = vpop.permute.xlu0 %78
    %82 = vset.pattern.permute.xlu0 0
    %83 = vperm.xlu0 %82, %v49
    %v84 = vpop.permute.xlu0 %83
    %87 = vset.pattern.permute.xlu0 0
    %88 = vperm.xlu0 %87, %v50
    %v89 = vpop.permute.xlu0 %88
    %92 = vset.pattern.permute.xlu0 0
    %93 = vperm.xlu0 %92, %v51
    %v94 = vpop.permute.xlu0 %93
    %97 = vset.pattern.permute.xlu0 0
    %98 = vperm.xlu0 %97, %v52
    %v99 = vpop.permute.xlu0 %98
    %102 = vset.pattern.permute.xlu0 0
    %103 = vperm.xlu0 %102, %v53
    %v104 = vpop.permute.xlu0 %103
    %107 = vset.pattern.permute.xlu0 0
    %108 = vperm.xlu0 %107, %v54
    %v109 = vpop.permute.xlu0 %108
    %112 = vset.pattern.permute.xlu0 0
    %113 = vperm.xlu0 %112, %v55
    %v114 = vpop.permute.xlu0 %113
    %117 = vset.pattern.permute.xlu0 0
    %118 = vperm.xlu0 %117, %v56
    %v119 = vpop.permute.xlu0 %118
    %122 = vset.pattern.permute.xlu0 0
    %123 = vperm.xlu0 %122, %v57
    %v124 = vpop.permute.xlu0 %123
    %127 = vset.pattern.permute.xlu0 0
    %128 = vperm.xlu0 %127, %v58
    %v129 = vpop.permute.xlu0 %128
    %132 = vset.pattern.permute.xlu0 0
    %133 = vperm.xlu0 %132, %v59
    %v134 = vpop.permute.xlu0 %133
    %137 = vset.pattern.permute.xlu0 0
    %138 = vperm.xlu0 %137, %v60
    %v139 = vpop.permute.xlu0 %138
    %vm141 = vcmask 64512
    %v143 = vsel %vm141, %v29, 0
    %v146 = vsel %vm141, %v30, 0
    %v149 = vsel %vm141, %v31, 0
    %v152 = vsel %vm141, %v32, 0
    %v155 = vsel %vm141, %v33, 0
    %v158 = vsel %vm141, %v34, 0
    %v161 = vsel %vm141, %v35, 0
    %v164 = vsel %vm141, %v36, 0
    %v167 = vsel %vm141, %v37, 0
    %v170 = vsel %vm141, %v38, 0
    %v173 = vsel %vm141, %v39, 0
    %v176 = vsel %vm141, %v40, 0
    %v179 = vsel %vm141, %v41, 0
    %v182 = vsel %vm141, %v42, 0
    %v185 = vsel %vm141, %v43, 0
    %v188 = vsel %vm141, %v44, 0
    %190 = vmatprep.subr.mxu0 0.0
    %191 = vmatpush1.msra.mxu0 0.0
    %192 = vmatprep.subr.mxu0 0.0
    %193 = vmatpush1.msra.mxu0 0.0
    %194 = vmatprep.subr.mxu0 0.0
    %195 = vmatpush1.msra.mxu0 0.0
    %196 = vmatprep.subr.mxu0 0.0
    %197 = vmatpush1.msra.mxu0 0.0
    %198 = vmatprep.subr.mxu0 0.0
    %199 = vmatpush1.msra.mxu0 0.0
    %200 = vmatprep.subr.mxu0 0.0
    %201 = vmatpush1.msra.mxu0 0.0
    %202 = vmatprep.subr.mxu0 0.0
    %203 = vmatpush1.msra.mxu0 0.0
    %204 = vmatprep.subr.mxu0 0.0
    %205 = vmatpush1.msra.mxu0 0.0
    %206 = vmatprep.subr.mxu0 0.0
    %207 = vmatpush1.msra.mxu0 0.0
    %208 = vmatprep.subr.mxu0 0.0
    %209 = vmatpush1.msra.mxu0 0.0
    %210 = vmatprep.subr.mxu0 0.0
    %211 = vmatpush1.msra.mxu0 0.0
    %212 = vmatprep.subr.mxu0 0.0
    %213 = vmatpush1.msra.mxu0 0.0
    %214 = vmatprep.subr.mxu0 0.0
    %215 = vmatpush1.msra.mxu0 0.0
    %216 = vmatprep.subr.mxu0 0.0
    %217 = vmatpush1.msra.mxu0 0.0
    %218 = vmatprep.subr.mxu0 0.0
    %219 = vmatpush1.msra.mxu0 0.0
    %220 = vmatprep.subr.mxu0 0.0
    %221 = vmatpush1.msra.mxu0 %v28
    %222 = vmatprep.subr.mxu0 0.0
    %223 = vmatpush2.msra.mxu0 0.0
    %224 = vmatprep.subr.mxu0 0.0
    %225 = vmatpush2.msra.mxu0 0.0
    %226 = vmatprep.subr.mxu0 0.0
    %227 = vmatpush2.msra.mxu0 0.0
    %228 = vmatprep.subr.mxu0 0.0
    %229 = vmatpush2.msra.mxu0 0.0
    %230 = vmatprep.subr.mxu0 0.0
    %231 = vmatpush2.msra.mxu0 0.0
    %232 = vmatprep.subr.mxu0 0.0
    %233 = vmatpush2.msra.mxu0 0.0
    %234 = vmatprep.subr.mxu0 0.0
    %235 = vmatpush2.msra.mxu0 0.0
    %236 = vmatprep.subr.mxu0 0.0
    %237 = vmatpush2.msra.mxu0 0.0
    %238 = vmatprep.subr.mxu0 0.0
    %239 = vmatpush2.msra.mxu0 0.0
    %240 = vmatprep.subr.mxu0 0.0
    %241 = vmatpush2.msra.mxu0 0.0
    %242 = vmatprep.subr.mxu0 0.0
    %243 = vmatpush2.msra.mxu0 0.0
    %244 = vmatprep.subr.mxu0 0.0
    %245 = vmatpush2.msra.mxu0 0.0
    %246 = vmatprep.subr.mxu0 0.0
    %247 = vmatpush2.msra.mxu0 0.0
    %248 = vmatprep.subr.mxu0 0.0
    %249 = vmatpush2.msra.mxu0 0.0
    %250 = vmatprep.subr.mxu0 0.0
    %251 = vmatpush2.msra.mxu0 0.0
    %252 = vmatprep.subr.mxu0 0.0
    %253 = vmatpush2.msra.mxu0 0.0
    %254 = vmatprep.mubr.f32.mxu0 0.0
    %255 = vmatmul.mubr.f32.gmra.mxu0 %v143
    %v256 = vpop.f32.mrf.mxu0
    %v257 = vadd.f32 %v64, %v256
    %v258 = vpop.f32.mrf.mxu0
    %259 = vmatprep.mubr.f32.mxu0 0.0
    %260 = vmatmul.mubr.f32.gmra.mxu0 %v146
    %v261 = vpop.f32.mrf.mxu0
    %v262 = vadd.f32 %v69, %v261
    %v263 = vpop.f32.mrf.mxu0
    %264 = vmatprep.mubr.f32.mxu0 0.0
    %265 = vmatmul.mubr.f32.gmra.mxu0 %v149
    %v266 = vpop.f32.mrf.mxu0
    %v267 = vadd.f32 %v74, %v266
    %v268 = vpop.f32.mrf.mxu0
    %269 = vmatprep.mubr.f32.mxu0 0.0
    %270 = vmatmul.mubr.f32.gmra.mxu0 %v152
    %v271 = vpop.f32.mrf.mxu0
    %v272 = vadd.f32 %v79, %v271
    %v273 = vpop.f32.mrf.mxu0
    %274 = vmatprep.mubr.f32.mxu0 0.0
    %275 = vmatmul.mubr.f32.gmra.mxu0 %v155
    %v276 = vpop.f32.mrf.mxu0
    %v277 = vadd.f32 %v84, %v276
    %v278 = vpop.f32.mrf.mxu0
    %279 = vmatprep.mubr.f32.mxu0 0.0
    %280 = vmatmul.mubr.f32.gmra.mxu0 %v158
    %v281 = vpop.f32.mrf.mxu0
    %v282 = vadd.f32 %v89, %v281
    %v283 = vpop.f32.mrf.mxu0
    %284 = vmatprep.mubr.f32.mxu0 0.0
    %285 = vmatmul.mubr.f32.gmra.mxu0 %v161
    %v286 = vpop.f32.mrf.mxu0
    %v287 = vadd.f32 %v94, %v286
    %v288 = vpop.f32.mrf.mxu0
    %289 = vmatprep.mubr.f32.mxu0 0.0
    %290 = vmatmul.mubr.f32.gmra.mxu0 %v164
    %v291 = vpop.f32.mrf.mxu0
    %v292 = vadd.f32 %v99, %v291
    %v293 = vpop.f32.mrf.mxu0
    %294 = vmatprep.mubr.f32.mxu0 0.0
    %295 = vmatmul.mubr.f32.gmra.mxu0 %v167
    %v296 = vpop.f32.mrf.mxu0
    %v297 = vadd.f32 %v104, %v296
    %v298 = vpop.f32.mrf.mxu0
    %299 = vmatprep.mubr.f32.mxu0 0.0
    %300 = vmatmul.mubr.f32.gmra.mxu0 %v170
    %v301 = vpop.f32.mrf.mxu0
    %v302 = vadd.f32 %v109, %v301
    %v303 = vpop.f32.mrf.mxu0
    %304 = vmatprep.mubr.f32.mxu0 0.0
    %305 = vmatmul.mubr.f32.gmra.mxu0 %v173
    %v306 = vpop.f32.mrf.mxu0
    %v307 = vadd.f32 %v114, %v306
    %v308 = vpop.f32.mrf.mxu0
    %309 = vmatprep.mubr.f32.mxu0 0.0
    %310 = vmatmul.mubr.f32.gmra.mxu0 %v176
    %v311 = vpop.f32.mrf.mxu0
    %v312 = vadd.f32 %v119, %v311
    %v313 = vpop.f32.mrf.mxu0
    %314 = vmatprep.mubr.f32.mxu0 0.0
    %315 = vmatmul.mubr.f32.gmra.mxu0 %v179
    %v316 = vpop.f32.mrf.mxu0
    %v317 = vadd.f32 %v124, %v316
    %v318 = vpop.f32.mrf.mxu0
    %319 = vmatprep.mubr.f32.mxu0 0.0
    %320 = vmatmul.mubr.f32.gmra.mxu0 %v182
    %v321 = vpop.f32.mrf.mxu0
    %v322 = vadd.f32 %v129, %v321
    %v323 = vpop.f32.mrf.mxu0
    %324 = vmatprep.mubr.f32.mxu0 0.0
    %325 = vmatmul.mubr.f32.gmra.mxu0 %v185
    %v326 = vpop.f32.mrf.mxu0
    %v327 = vadd.f32 %v134, %v326
    %v328 = vpop.f32.mrf.mxu0
    %329 = vmatprep.mubr.f32.mxu0 0.0
    %330 = vmatmul.mubr.f32.gmra.mxu0 %v188
    %v331 = vpop.f32.mrf.mxu0
    %v332 = vadd.f32 %v139, %v331
    %v333 = vpop.f32.mrf.mxu0
    %334 = vdwg.mxu0
    %v335 = vmax.f32 %v257, 0.0
    %v336 = vmax.f32 %v262, 0.0
    %v337 = vmax.f32 %v267, 0.0
    %v338 = vmax.f32 %v272, 0.0
    %v339 = vmax.f32 %v277, 0.0
    %v340 = vmax.f32 %v282, 0.0
    %v341 = vmax.f32 %v287, 0.0
    %v342 = vmax.f32 %v292, 0.0
    %v343 = vmax.f32 %v297, 0.0
    %v344 = vmax.f32 %v302, 0.0
    %v345 = vmax.f32 %v307, 0.0
    %v346 = vmax.f32 %v312, 0.0
    %v347 = vmax.f32 %v317, 0.0
    %v348 = vmax.f32 %v322, 0.0
    %v349 = vmax.f32 %v327, 0.0
    %v350 = vmax.f32 %v332, 0.0
    %v351 = vld [vmem:[%s3] sm:$0xff]
    %v352 = vld [vmem:[%s3 + $0x8] sm:$0xff]
    %v353 = vld [vmem:[%s3 + $0x10] sm:$0xff]
    %v354 = vld [vmem:[%s3 + $0x18] sm:$0xff]
    %v355 = vld [vmem:[%s3 + $0x20] sm:$0xff]
    %v356 = vld [vmem:[%s3 + $0x28] sm:$0xff]
    %v357 = vld [vmem:[%s3 + $0x30] sm:$0xff]
    %v358 = vld [vmem:[%s3 + $0x38] sm:$0xff]
    %v359 = vld [vmem:[%s3 + $0x40] sm:$0xff]
    %v360 = vld [vmem:[%s3 + $0x48] sm:$0xff]
    %v361 = vld [vmem:[%s3 + $0x50] sm:$0xff]
    %v362 = vld [vmem:[%s3 + $0x58] sm:$0xff]
    %v363 = vld [vmem:[%s3 + $0x60] sm:$0xff]
    %v364 = vld [vmem:[%s3 + $0x68] sm:$0xff]
    %v365 = vld [vmem:[%s3 + $0x70] sm:$0xff]
    %v366 = vld [vmem:[%s3 + $0x78] sm:$0xff]
    %v367 = vld [vmem:[%s4] sm:$0xff]
    %v368 = vld [vmem:[%s4 + $0x8] sm:$0xff]
    %v369 = vld [vmem:[%s4 + $0x10] sm:$0xff]
    %v370 = vld [vmem:[%s4 + $0x18] sm:$0xff]
    %v371 = vld [vmem:[%s4 + $0x20] sm:$0xff]
    %v372 = vld [vmem:[%s4 + $0x28] sm:$0xff]
    %v373 = vld [vmem:[%s4 + $0x30] sm:$0xff]
    %v374 = vld [vmem:[%s4 + $0x38] sm:$0xff]
    %v375 = vld [vmem:[%s4 + $0x40] sm:$0xff]
    %v376 = vld [vmem:[%s4 + $0x48] sm:$0xff]
    %v377 = vld [vmem:[%s4 + $0x50] sm:$0xff]
    %v378 = vld [vmem:[%s4 + $0x58] sm:$0xff]
    %v379 = vld [vmem:[%s4 + $0x60] sm:$0xff]
    %v380 = vld [vmem:[%s4 + $0x68] sm:$0xff]
    %v381 = vld [vmem:[%s4 + $0x70] sm:$0xff]
    %v382 = vld [vmem:[%s4 + $0x78] sm:$0xff]
    %384 = vset.pattern.permute.xlu0 0
    %385 = vperm.xlu0 %384, %v367
    %v386 = vpop.permute.xlu0 %385
    %389 = vset.pattern.permute.xlu0 0
    %390 = vperm.xlu0 %389, %v368
    %v391 = vpop.permute.xlu0 %390
    %394 = vset.pattern.permute.xlu0 0
    %395 = vperm.xlu0 %394, %v369
    %v396 = vpop.permute.xlu0 %395
    %399 = vset.pattern.permute.xlu0 0
    %400 = vperm.xlu0 %399, %v370
    %v401 = vpop.permute.xlu0 %400
    %404 = vset.pattern.permute.xlu0 0
    %405 = vperm.xlu0 %404, %v371
    %v406 = vpop.permute.xlu0 %405
    %409 = vset.pattern.permute.xlu0 0
    %410 = vperm.xlu0 %409, %v372
    %v411 = vpop.permute.xlu0 %410
    %414 = vset.pattern.permute.xlu0 0
    %415 = vperm.xlu0 %414, %v373
    %v416 = vpop.permute.xlu0 %415
    %419 = vset.pattern.permute.xlu0 0
    %420 = vperm.xlu0 %419, %v374
    %v421 = vpop.permute.xlu0 %420
    %424 = vset.pattern.permute.xlu0 0
    %425 = vperm.xlu0 %424, %v375
    %v426 = vpop.permute.xlu0 %425
    %429 = vset.pattern.permute.xlu0 0
    %430 = vperm.xlu0 %429, %v376
    %v431 = vpop.permute.xlu0 %430
    %434 = vset.pattern.permute.xlu0 0
    %435 = vperm.xlu0 %434, %v377
    %v436 = vpop.permute.xlu0 %435
    %439 = vset.pattern.permute.xlu0 0
    %440 = vperm.xlu0 %439, %v378
    %v441 = vpop.permute.xlu0 %440
    %444 = vset.pattern.permute.xlu0 0
    %445 = vperm.xlu0 %444, %v379
    %v446 = vpop.permute.xlu0 %445
    %449 = vset.pattern.permute.xlu0 0
    %450 = vperm.xlu0 %449, %v380
    %v451 = vpop.permute.xlu0 %450
    %454 = vset.pattern.permute.xlu0 0
    %455 = vperm.xlu0 %454, %v381
    %v456 = vpop.permute.xlu0 %455
    %459 = vset.pattern.permute.xlu0 0
    %460 = vperm.xlu0 %459, %v382
    %v461 = vpop.permute.xlu0 %460
    %463 = vmatprep.subr.mxu0 0.0
    %464 = vmatpush1.msra.mxu0 %v350
    %465 = vmatprep.subr.mxu0 0.0
    %466 = vmatpush1.msra.mxu0 %v349
    %467 = vmatprep.subr.mxu0 0.0
    %468 = vmatpush1.msra.mxu0 %v348
    %469 = vmatprep.subr.mxu0 0.0
    %470 = vmatpush1.msra.mxu0 %v347
    %471 = vmatprep.subr.mxu0 0.0
    %472 = vmatpush1.msra.mxu0 %v346
    %473 = vmatprep.subr.mxu0 0.0
    %474 = vmatpush1.msra.mxu0 %v345
    %475 = vmatprep.subr.mxu0 0.0
    %476 = vmatpush1.msra.mxu0 %v344
    %477 = vmatprep.subr.mxu0 0.0
    %478 = vmatpush1.msra.mxu0 %v343
    %479 = vmatprep.subr.mxu0 0.0
    %480 = vmatpush1.msra.mxu0 %v342
    %481 = vmatprep.subr.mxu0 0.0
    %482 = vmatpush1.msra.mxu0 %v341
    %483 = vmatprep.subr.mxu0 0.0
    %484 = vmatpush1.msra.mxu0 %v340
    %485 = vmatprep.subr.mxu0 0.0
    %486 = vmatpush1.msra.mxu0 %v339
    %487 = vmatprep.subr.mxu0 0.0
    %488 = vmatpush1.msra.mxu0 %v338
    %489 = vmatprep.subr.mxu0 0.0
    %490 = vmatpush1.msra.mxu0 %v337
    %491 = vmatprep.subr.mxu0 0.0
    %492 = vmatpush1.msra.mxu0 %v336
    %493 = vmatprep.subr.mxu0 0.0
    %494 = vmatpush1.msra.mxu0 %v335
    %495 = vmatprep.subr.mxu0 0.0
    %496 = vmatpush2.msra.mxu0 0.0
    %497 = vmatprep.subr.mxu0 0.0
    %498 = vmatpush2.msra.mxu0 0.0
    %499 = vmatprep.subr.mxu0 0.0
    %500 = vmatpush2.msra.mxu0 0.0
    %501 = vmatprep.subr.mxu0 0.0
    %502 = vmatpush2.msra.mxu0 0.0
    %503 = vmatprep.subr.mxu0 0.0
    %504 = vmatpush2.msra.mxu0 0.0
    %505 = vmatprep.subr.mxu0 0.0
    %506 = vmatpush2.msra.mxu0 0.0
    %507 = vmatprep.subr.mxu0 0.0
    %508 = vmatpush2.msra.mxu0 0.0
    %509 = vmatprep.subr.mxu0 0.0
    %510 = vmatpush2.msra.mxu0 0.0
    %511 = vmatprep.subr.mxu0 0.0
    %512 = vmatpush2.msra.mxu0 0.0
    %513 = vmatprep.subr.mxu0 0.0
    %514 = vmatpush2.msra.mxu0 0.0
    %515 = vmatprep.subr.mxu0 0.0
    %516 = vmatpush2.msra.mxu0 0.0
    %517 = vmatprep.subr.mxu0 0.0
    %518 = vmatpush2.msra.mxu0 0.0
    %519 = vmatprep.subr.mxu0 0.0
    %520 = vmatpush2.msra.mxu0 0.0
    %521 = vmatprep.subr.mxu0 0.0
    %522 = vmatpush2.msra.mxu0 0.0
    %523 = vmatprep.subr.mxu0 0.0
    %524 = vmatpush2.msra.mxu0 0.0
    %525 = vmatprep.subr.mxu0 0.0
    %526 = vmatpush2.msra.mxu0 0.0
    %527 = vmatprep.mubr.f32.mxu0 0.0
    %528 = vmatmul.mubr.f32.gmra.mxu0 %v351
    %v529 = vpop.f32.mrf.mxu0
    %v530 = vadd.f32 %v386, %v529
    %v531 = vpop.f32.mrf.mxu0
    %532 = vmatprep.mubr.f32.mxu0 0.0
    %533 = vmatmul.mubr.f32.gmra.mxu0 %v352
    %v534 = vpop.f32.mrf.mxu0
    %v535 = vadd.f32 %v391, %v534
    %v536 = vpop.f32.mrf.mxu0
    %537 = vmatprep.mubr.f32.mxu0 0.0
    %538 = vmatmul.mubr.f32.gmra.mxu0 %v353
    %v539 = vpop.f32.mrf.mxu0
    %v540 = vadd.f32 %v396, %v539
    %v541 = vpop.f32.mrf.mxu0
    %542 = vmatprep.mubr.f32.mxu0 0.0
    %543 = vmatmul.mubr.f32.gmra.mxu0 %v354
    %v544 = vpop.f32.mrf.mxu0
    %v545 = vadd.f32 %v401, %v544
    %v546 = vpop.f32.mrf.mxu0
    %547 = vmatprep.mubr.f32.mxu0 0.0
    %548 = vmatmul.mubr.f32.gmra.mxu0 %v355
    %v549 = vpop.f32.mrf.mxu0
    %v550 = vadd.f32 %v406, %v549
    %v551 = vpop.f32.mrf.mxu0
    %552 = vmatprep.mubr.f32.mxu0 0.0
    %553 = vmatmul.mubr.f32.gmra.mxu0 %v356
    %v554 = vpop.f32.mrf.mxu0
    %v555 = vadd.f32 %v411, %v554
    %v556 = vpop.f32.mrf.mxu0
    %557 = vmatprep.mubr.f32.mxu0 0.0
    %558 = vmatmul.mubr.f32.gmra.mxu0 %v357
    %v559 = vpop.f32.mrf.mxu0
    %v560 = vadd.f32 %v416, %v559
    %v561 = vpop.f32.mrf.mxu0
    %562 = vmatprep.mubr.f32.mxu0 0.0
    %563 = vmatmul.mubr.f32.gmra.mxu0 %v358
    %v564 = vpop.f32.mrf.mxu0
    %v565 = vadd.f32 %v421, %v564
    %v566 = vpop.f32.mrf.mxu0
    %567 = vmatprep.mubr.f32.mxu0 0.0
    %568 = vmatmul.mubr.f32.gmra.mxu0 %v359
    %v569 = vpop.f32.mrf.mxu0
    %v570 = vadd.f32 %v426, %v569
    %v571 = vpop.f32.mrf.mxu0
    %572 = vmatprep.mubr.f32.mxu0 0.0
    %573 = vmatmul.mubr.f32.gmra.mxu0 %v360
    %v574 = vpop.f32.mrf.mxu0
    %v575 = vadd.f32 %v431, %v574
    %v576 = vpop.f32.mrf.mxu0
    %577 = vmatprep.mubr.f32.mxu0 0.0
    %578 = vmatmul.mubr.f32.gmra.mxu0 %v361
    %v579 = vpop.f32.mrf.mxu0
    %v580 = vadd.f32 %v436, %v579
    %v581 = vpop.f32.mrf.mxu0
    %582 = vmatprep.mubr.f32.mxu0 0.0
    %583 = vmatmul.mubr.f32.gmra.mxu0 %v362
    %v584 = vpop.f32.mrf.mxu0
    %v585 = vadd.f32 %v441, %v584
    %v586 = vpop.f32.mrf.mxu0
    %587 = vmatprep.mubr.f32.mxu0 0.0
    %588 = vmatmul.mubr.f32.gmra.mxu0 %v363
    %v589 = vpop.f32.mrf.mxu0
    %v590 = vadd.f32 %v446, %v589
    %v591 = vpop.f32.mrf.mxu0
    %592 = vmatprep.mubr.f32.mxu0 0.0
    %593 = vmatmul.mubr.f32.gmra.mxu0 %v364
    %v594 = vpop.f32.mrf.mxu0
    %v595 = vadd.f32 %v451, %v594
    %v596 = vpop.f32.mrf.mxu0
    %597 = vmatprep.mubr.f32.mxu0 0.0
    %598 = vmatmul.mubr.f32.gmra.mxu0 %v365
    %v599 = vpop.f32.mrf.mxu0
    %v600 = vadd.f32 %v456, %v599
    %v601 = vpop.f32.mrf.mxu0
    %602 = vmatprep.mubr.f32.mxu0 0.0
    %603 = vmatmul.mubr.f32.gmra.mxu0 %v366
    %v604 = vpop.f32.mrf.mxu0
    %v605 = vadd.f32 %v461, %v604
    %v606 = vpop.f32.mrf.mxu0
    %607 = vdwg.mxu0
    %v608 = vmax.f32 %v530, 0.0
    %v609 = vmax.f32 %v535, 0.0
    %v610 = vmax.f32 %v540, 0.0
    %v611 = vmax.f32 %v545, 0.0
    %v612 = vmax.f32 %v550, 0.0
    %v613 = vmax.f32 %v555, 0.0
    %v614 = vmax.f32 %v560, 0.0
    %v615 = vmax.f32 %v565, 0.0
    %v616 = vmax.f32 %v570, 0.0
    %v617 = vmax.f32 %v575, 0.0
    %v618 = vmax.f32 %v580, 0.0
    %v619 = vmax.f32 %v585, 0.0
    %v620 = vmax.f32 %v590, 0.0
    %v621 = vmax.f32 %v595, 0.0
    %v622 = vmax.f32 %v600, 0.0
    %v623 = vmax.f32 %v605, 0.0
    %v624 = vld [vmem:[%s5] sm:$0x1]
    %s625 = sld [smem:[#allocation2]]
    %v626 = vstv %s625
    %627 = vmatprep.subr.mxu0 0.0
    %628 = vmatpush1.msra.mxu0 %v623
    %629 = vmatprep.subr.mxu0 0.0
    %630 = vmatpush1.msra.mxu0 %v622
    %631 = vmatprep.subr.mxu0 0.0
    %632 = vmatpush1.msra.mxu0 %v621
    %633 = vmatprep.subr.mxu0 0.0
    %634 = vmatpush1.msra.mxu0 %v620
    %635 = vmatprep.subr.mxu0 0.0
    %636 = vmatpush1.msra.mxu0 %v619
    %637 = vmatprep.subr.mxu0 0.0
    %638 = vmatpush1.msra.mxu0 %v618
    %639 = vmatprep.subr.mxu0 0.0
    %640 = vmatpush1.msra.mxu0 %v617
    %641 = vmatprep.subr.mxu0 0.0
    %642 = vmatpush1.msra.mxu0 %v616
    %643 = vmatprep.subr.mxu0 0.0
    %644 = vmatpush1.msra.mxu0 %v615
    %645 = vmatprep.subr.mxu0 0.0
    %646 = vmatpush1.msra.mxu0 %v614
    %647 = vmatprep.subr.mxu0 0.0
    %648 = vmatpush1.msra.mxu0 %v613
    %649 = vmatprep.subr.mxu0 0.0
    %650 = vmatpush1.msra.mxu0 %v612
    %651 = vmatprep.subr.mxu0 0.0
    %652 = vmatpush1.msra.mxu0 %v611
    %653 = vmatprep.subr.mxu0 0.0
    %654 = vmatpush1.msra.mxu0 %v610
    %655 = vmatprep.subr.mxu0 0.0
    %656 = vmatpush1.msra.mxu0 %v609
    %657 = vmatprep.subr.mxu0 0.0
    %658 = vmatpush1.msra.mxu0 %v608
    %659 = vmatprep.subr.mxu0 0.0
    %660 = vmatpush2.msra.mxu0 0.0
    %661 = vmatprep.subr.mxu0 0.0
    %662 = vmatpush2.msra.mxu0 0.0
    %663 = vmatprep.subr.mxu0 0.0
    %664 = vmatpush2.msra.mxu0 0.0
    %665 = vmatprep.subr.mxu0 0.0
    %666 = vmatpush2.msra.mxu0 0.0
    %667 = vmatprep.subr.mxu0 0.0
    %668 = vmatpush2.msra.mxu0 0.0
    %669 = vmatprep.subr.mxu0 0.0
    %670 = vmatpush2.msra.mxu0 0.0
    %671 = vmatprep.subr.mxu0 0.0
    %672 = vmatpush2.msra.mxu0 0.0
    %673 = vmatprep.subr.mxu0 0.0
    %674 = vmatpush2.msra.mxu0 0.0
    %675 = vmatprep.subr.mxu0 0.0
    %676 = vmatpush2.msra.mxu0 0.0
    %677 = vmatprep.subr.mxu0 0.0
    %678 = vmatpush2.msra.mxu0 0.0
    %679 = vmatprep.subr.mxu0 0.0
    %680 = vmatpush2.msra.mxu0 0.0
    %681 = vmatprep.subr.mxu0 0.0
    %682 = vmatpush2.msra.mxu0 0.0
    %683 = vmatprep.subr.mxu0 0.0
    %684 = vmatpush2.msra.mxu0 0.0
    %685 = vmatprep.subr.mxu0 0.0
    %686 = vmatpush2.msra.mxu0 0.0
    %687 = vmatprep.subr.mxu0 0.0
    %688 = vmatpush2.msra.mxu0 0.0
    %689 = vmatprep.subr.mxu0 0.0
    %690 = vmatpush2.msra.mxu0 0.0
    %691 = vmatprep.mubr.f32.mxu0 0.0
    %692 = vmatmul.mubr.f32.gmra.mxu0 %v624
    %v693 = vpop.f32.mrf.mxu0
    %v694 = vadd.f32 %v626, %v693
    %v695 = vpop.f32.mrf.mxu0
    %696 = vdwg.mxu0
    %697 = vst [vmem:[#allocation3] sm:$0x1] %v694
    // Predicated region
    $region30: #{tpu_custom_call.1} parent=1 // pred_check
      _
    $region31: #{tpu_custom_call.1} parent=1 // pred_check_branch
      %699 = sbr.rel (0) target = $region33
    $region32: #{tpu_custom_call.1} parent=1 // pred_region
      %s701 = ssub.s32 16, 16
      %702 = vsyncadd [#allocation4], %s701
      %s704 = sshll.u32 [#allocation3], 4
      %s705 = int_to_ptr.vmem [resolvable:$true] %s704
      %707 = dma.vmem_to_hbm [thread:$0]  %s705, 16, %s7, [#allocation4]
    $region33: #{tpu_custom_call.1} parent=1 // pred_fallthru
      _
    // Predicated region
    $region34: #{tpu_custom_call.1} parent=1 // pred_check
      _
    $region35: #{tpu_custom_call.1} parent=1 // pred_check_branch
      %709 = sbr.rel (0) target = $region37
    $region36: #{tpu_custom_call.1} parent=1 // pred_region
      %710 = dma.done [#allocation4], 16
    $region37: #{tpu_custom_call.1} parent=1 // pred_fallthru
      _
    %711 = vsyncpa [#allocation4], 1

</llo_original>
